<compile_context>
chip_gen: v7x
topology: tpu7x:2x2x1
jax: 0.10.0
libtpu: 0.0.40
codegen_flags: <defaults>
</compile_context>

<pallas_src>
import functools

import jax
import jax.numpy as jnp
from jax.experimental import pallas as pl
from jax.experimental.pallas import tpu as pltpu


def _round_up(x, m):
    return (x + m - 1) // m * m


def _vmem_capacity_bytes():
    try:
        return int(pltpu.get_tpu_info().vmem_capacity_bytes)
    except Exception:
        return 64 * 1024 * 1024          # conservative: v7x per-TC VMEM


_CORE_PARALLEL_OK = None


def _core_parallel_supported():
    """CORE_PARALLEL only pays off on multi-TensorCore chips (v7x).

    Probe the lowering once per process (cached); any other device or any
    lowering failure falls back to plain "parallel"."""
    global _CORE_PARALLEL_OK
    if _CORE_PARALLEL_OK is not None:
        return _CORE_PARALLEL_OK
    ok = False
    try:
        kind = jax.devices()[0].device_kind.lower()
    except Exception:
        kind = ""
    if "v7" in kind:
        try:
            def _probe(x_ref, o_ref):
                o_ref[...] = x_ref[...] + 1.0

            call = pl.pallas_call(
                _probe,
                out_shape=jax.ShapeDtypeStruct((24, 128), jnp.float32),
                grid=(3,),
                in_specs=[pl.BlockSpec((8, 128), lambda i: (i, 0))],
                out_specs=pl.BlockSpec((8, 128), lambda i: (i, 0)),
                compiler_params=pltpu.CompilerParams(
                    dimension_semantics=(pltpu.CORE_PARALLEL,)),
            )
            jax.jit(call).lower(jnp.zeros((24, 128), jnp.float32)).compile()
            ok = True
        except Exception:
            ok = False
    _CORE_PARALLEL_OK = ok
    return ok


def cls_head_kernel(x_ref, w1_ref, b1_ref, w2_ref, b2_ref, out_ref, *,
                    row_chunk):
    # x_ref:  (tm, H)   row tile of flattened encoder outputs (native dtype)
    # w1_ref: (H, H)    dense weight, pre-transposed to (in, out) layout
    # b1_ref: (1, H)    dense bias (f32)
    # w2_ref: (H, Lp)   output_proj weight, pre-transposed + lane-padded
    # b2_ref: (1, Lp)   output_proj bias (f32, lane-padded)
    # out_ref:(tm, Lp)  logits tile (f32)
    # NOTE: dropout is identity in eval/inference mode, so it is omitted.
    cdt = w1_ref.dtype                       # MXU compute dtype (bf16 or f32)
    w1 = w1_ref[...]
    b1 = b1_ref[...]
    w2 = w2_ref[...]
    b2 = b2_ref[...]
    tm = x_ref.shape[0]
    # Unrolled sub-chunk loop: chunk j+1's first matmul (MXU) overlaps chunk
    # j's bias + tanh + cast epilogue (VPU/EUP slots).
    for j in range(tm // row_chunk):
        rows = pl.ds(j * row_chunk, row_chunk)
        xj = x_ref[rows, :].astype(cdt)                  # in-kernel cast (VPU)
        h = jnp.dot(xj, w1, preferred_element_type=jnp.float32)
        h = jnp.tanh(h + b1).astype(cdt)                 # f32 epilogue, bf16 out
        y = jnp.dot(h, w2, preferred_element_type=jnp.float32)
        out_ref[rows, :] = (y + b2).astype(out_ref.dtype)


def cls_head(x, w_dense, b_dense, w_out, b_out, *, tm=2048, use_bf16=True):
    """x: [B, S, H]. Weights in PyTorch nn.Linear layout:
       w_dense (H, H), b_dense (H,), w_out (L, H), b_out (L,).
       Returns logits [B, S, L] as float32."""
    B, S, H = x.shape
    L = w_out.shape[0]
    M = B * S

    cdt = jnp.bfloat16 if use_bf16 else jnp.float32
    wb = jnp.dtype(cdt).itemsize             # weight / compute bytes
    xb = jnp.dtype(x.dtype).itemsize         # x is read in its native dtype
    Lp = _round_up(max(L, 128), 128)         # lane-dense output columns

    # ---- generation-aware VMEM budget (v7x has 64 MiB/TC, v5e/v6e 128 MiB).
    vmem_cap = _vmem_capacity_bytes()
    budget = vmem_cap // 2

    def vmem_need(t):
        c = 256 if t % 256 == 0 else t       # per-sub-chunk intermediates
        return (2 * t * H * xb               # x tile, double-buffered
                + 2 * (H * H + H * Lp) * wb  # weights (worst case: 2 buffers)
                + 2 * (H + Lp) * 4           # biases
                + 2 * t * Lp * 4             # output tile, double-buffered
                + c * H * (4 + 2 * wb)       # h (f32 + cast) + x cast, per chunk
                + c * Lp * 4)                # logits f32, per chunk

    # ---- row tile: 256-aligned (MXU M granularity), as large as the VMEM
    #      budget allows; small problems collapse to one exact full block.
    if M <= 512:
        tm_eff = M
    else:
        tm_eff = min(_round_up(tm, 256), _round_up(M, 256))
        while tm_eff > 256 and vmem_need(tm_eff) > budget:
            tm_eff = _round_up(tm_eff // 2, 256)
        if tm_eff >= M:
            tm_eff = M                       # single exact block (always legal)
    row_chunk = 256 if tm_eff % 256 == 0 else tm_eff
    assert tm_eff % row_chunk == 0
    grid_m = (M + tm_eff - 1) // tm_eff      # ragged tail handled by Pallas

    # ---- one-time operand prep (weights only; x stays untouched in HBM).
    x2d = x.reshape(M, H)                                        # free reshape
    w1t = w_dense.astype(cdt).T                                  # (H, H) (in,out)
    b1 = b_dense.reshape(1, H).astype(jnp.float32)
    w2t = jnp.pad(w_out, ((0, Lp - L), (0, 0))).astype(cdt).T    # (H, Lp)
    b2 = jnp.pad(b_out, (0, Lp - L)).reshape(1, Lp).astype(jnp.float32)

    row_sem = (pltpu.CORE_PARALLEL
               if (grid_m > 1 and _core_parallel_supported()) else "parallel")
    compiler_kwargs = dict(dimension_semantics=(row_sem,))
    need = vmem_need(tm_eff)
    if need > 12 * 1024 * 1024:
        compiler_kwargs["vmem_limit_bytes"] = int(
            min(max(need * 3 // 2, 32 * 1024 * 1024), vmem_cap * 3 // 4))

    cost = pl.CostEstimate(
        flops=2 * grid_m * tm_eff * H * (H + Lp),
        transcendentals=grid_m * tm_eff * H,
        bytes_accessed=(M * H * xb + (w1t.size + w2t.size) * wb
                        + (b1.size + b2.size) * 4 + M * Lp * 4),
    )

    out = pl.pallas_call(
        functools.partial(cls_head_kernel, row_chunk=row_chunk),
        out_shape=jax.ShapeDtypeStruct((M, Lp), jnp.float32),
        grid=(grid_m,),
        in_specs=[
            pl.BlockSpec((tm_eff, H), lambda i: (i, 0)),   # x row tile
            pl.BlockSpec((H, H), lambda i: (0, 0)),        # dense W^T (grid-invariant)
            pl.BlockSpec((1, H), lambda i: (0, 0)),        # dense bias
            pl.BlockSpec((H, Lp), lambda i: (0, 0)),       # out-proj W^T
            pl.BlockSpec((1, Lp), lambda i: (0, 0)),       # out-proj bias
        ],
        out_specs=pl.BlockSpec((tm_eff, Lp), lambda i: (i, 0)),
        compiler_params=pltpu.CompilerParams(**compiler_kwargs),
        cost_estimate=cost,
    )(x2d, w1t, b1, w2t, b2)

    return out[:, :L].reshape(B, S, L)


def cls_head_reference(x, w_dense, b_dense, w_out, b_out):
    h = jnp.tanh(jnp.einsum("bsh,oh->bso", x, w_dense) + b_dense)
    return jnp.einsum("bsh,oh->bso", h, w_out) + b_out


if __name__ == "__main__":
    # Small, module-consistent shapes: batch=2, seq=8, hidden=32, num_labels=4
    B, S, H, L = 2, 8, 32, 4

    key = jax.random.PRNGKey(0)
    kx, kw1, kb1, kw2, kb2 = jax.random.split(key, 5)

    x = jax.random.normal(kx, (B, S, H), dtype=jnp.float32)
    # nn.Linear(hidden, hidden): weight (H, H), bias (H,)
    w_dense = jax.random.normal(kw1, (H, H), dtype=jnp.float32) * 0.05
    b_dense = jax.random.normal(kb1, (H,), dtype=jnp.float32) * 0.05
    # nn.Linear(hidden, num_labels): weight (L, H), bias (L,)
    w_out = jax.random.normal(kw2, (L, H), dtype=jnp.float32) * 0.05
    b_out = jax.random.normal(kb2, (L,), dtype=jnp.float32) * 0.05

    ref = cls_head_reference(x, w_dense, b_dense, w_out, b_out)

    # f32 path: tight tolerance.
    logits_f32 = jax.block_until_ready(
        cls_head(x, w_dense, b_dense, w_out, b_out, use_bf16=False))
    assert logits_f32.shape == (B, S, L)
    assert jnp.allclose(logits_f32, ref, atol=1e-4, rtol=1e-4), "f32 mismatch"

    # bf16-MXU path (default): f32 accumulation/epilogue, looser tolerance.
    logits = jax.block_until_ready(cls_head(x, w_dense, b_dense, w_out, b_out))
    assert logits.shape == (B, S, L)
    assert jnp.allclose(logits, ref, atol=2e-2, rtol=2e-2), "bf16 mismatch"

    print("KERNEL_OK")
</pallas_src>

<mosaic_0001>
module attributes {stable_mosaic.version = 11 : i64} {
  func.func @cls_head_kernel(%arg0: i32, %arg1: memref<16x32xf32, #tpu.memory_space<vmem>>, %arg2: memref<32x32xf32, #tpu.memory_space<vmem>>, %arg3: memref<1x32xf32, #tpu.memory_space<vmem>>, %arg4: memref<32x128xf32, #tpu.memory_space<vmem>>, %arg5: memref<1x128xf32, #tpu.memory_space<vmem>>, %arg6: memref<16x128xf32, #tpu.memory_space<vmem>>) attributes {dimension_semantics = [#tpu.dimension_semantics<parallel>], iteration_bounds = array<i64: 1>, scalar_prefetch = 0 : i64, scratch_operands = 0 : i64, tpu.core_type = #tpu.core_type<tc>, window_params = [{transform_indices = @transform_0, window_bounds = array<i64: 16, 32>}, {pipeline_mode = #tpu.pipeline_mode<synchronous>, transform_indices = @transform_1, window_bounds = array<i64: 32, 32>}, {pipeline_mode = #tpu.pipeline_mode<synchronous>, transform_indices = @transform_2, window_bounds = array<i64: 1, 32>}, {pipeline_mode = #tpu.pipeline_mode<synchronous>, transform_indices = @transform_3, window_bounds = array<i64: 32, 128>}, {pipeline_mode = #tpu.pipeline_mode<synchronous>, transform_indices = @transform_4, window_bounds = array<i64: 1, 128>}, {transform_indices = @transform_5, window_bounds = array<i64: 16, 128>}]} {
    %c0 = arith.constant 0 : index
    %c0_0 = arith.constant 0 : index
    %0 = vector.load %arg2[%c0, %c0_0] : memref<32x32xf32, #tpu.memory_space<vmem>>, vector<32x32xf32>
    %c0_1 = arith.constant 0 : index
    %c0_2 = arith.constant 0 : index
    %1 = vector.load %arg3[%c0_1, %c0_2] : memref<1x32xf32, #tpu.memory_space<vmem>>, vector<1x32xf32>
    %c0_3 = arith.constant 0 : index
    %c0_4 = arith.constant 0 : index
    %2 = vector.load %arg4[%c0_3, %c0_4] : memref<32x128xf32, #tpu.memory_space<vmem>>, vector<32x128xf32>
    %c0_5 = arith.constant 0 : index
    %c0_6 = arith.constant 0 : index
    %3 = vector.load %arg5[%c0_5, %c0_6] : memref<1x128xf32, #tpu.memory_space<vmem>>, vector<1x128xf32>
    %c0_7 = arith.constant 0 : index
    %c0_8 = arith.constant 0 : index
    %4 = vector.load %arg1[%c0_7, %c0_8] : memref<16x32xf32, #tpu.memory_space<vmem>>, vector<16x32xf32>
    %cst = arith.constant dense<0.000000e+00> : vector<16x32xf32>
    %5 = tpu.matmul %4, %0, %cst {dimension_numbers = #tpu.dot_dimension_numbers<[1], [0], [0], [1], [0, 0, 1, 1], [], []>} : vector<16x32xf32>, vector<32x32xf32>, vector<16x32xf32> -> vector<16x32xf32>
    %6 = vector.broadcast %1 : vector<1x32xf32> to vector<16x32xf32>
    %7 = arith.addf %5, %6 : vector<16x32xf32>
    %8 = math.tanh %7 : vector<16x32xf32>
    %cst_9 = arith.constant dense<0.000000e+00> : vector<16x128xf32>
    %9 = tpu.matmul %8, %2, %cst_9 {dimension_numbers = #tpu.dot_dimension_numbers<[1], [0], [0], [1], [0, 0, 1, 1], [], []>} : vector<16x32xf32>, vector<32x128xf32>, vector<16x128xf32> -> vector<16x128xf32>
    %10 = vector.broadcast %3 : vector<1x128xf32> to vector<16x128xf32>
    %11 = arith.addf %9, %10 : vector<16x128xf32>
    %c0_10 = arith.constant 0 : index
    %c0_11 = arith.constant 0 : index
    %12 = vector.load %arg6[%c0_10, %c0_11] : memref<16x128xf32, #tpu.memory_space<vmem>>, vector<16x128xf32>
    tpu.vector_store %arg6[%c0_10, %c0_11], %11 {strides = array<i32>} : memref<16x128xf32, #tpu.memory_space<vmem>>, vector<16x128xf32>,
    return
  }
  func.func @transform_0(%arg0: i32) -> (i32, i32) {
    %c0_i32 = arith.constant 0 : i32
    %c0_i32_0 = arith.constant 0 : i32
    return %arg0, %c0_i32 : i32, i32
  }
  func.func @transform_1(%arg0: i32) -> (i32, i32) {
    %c0_i32 = arith.constant 0 : i32
    %c0_i32_0 = arith.constant 0 : i32
    %c0_i32_1 = arith.constant 0 : i32
    return %c0_i32, %c0_i32_0 : i32, i32
  }
  func.func @transform_2(%arg0: i32) -> (i32, i32) {
    %c0_i32 = arith.constant 0 : i32
    %c0_i32_0 = arith.constant 0 : i32
    %c0_i32_1 = arith.constant 0 : i32
    return %c0_i32, %c0_i32_0 : i32, i32
  }
  func.func @transform_3(%arg0: i32) -> (i32, i32) {
    %c0_i32 = arith.constant 0 : i32
    %c0_i32_0 = arith.constant 0 : i32
    %c0_i32_1 = arith.constant 0 : i32
    return %c0_i32, %c0_i32_0 : i32, i32
  }
  func.func @transform_4(%arg0: i32) -> (i32, i32) {
    %c0_i32 = arith.constant 0 : i32
    %c0_i32_0 = arith.constant 0 : i32
    %c0_i32_1 = arith.constant 0 : i32
    return %c0_i32, %c0_i32_0 : i32, i32
  }
  func.func @transform_5(%arg0: i32) -> (i32, i32) {
    %c0_i32 = arith.constant 0 : i32
    %c0_i32_0 = arith.constant 0 : i32
    return %arg0, %c0_i32 : i32, i32
  }
}

</mosaic_0001>

<llo_original>
// kernel: tpu_custom_call.1
$region0: #{tpu_custom_call.1}
  #allocation0 [shape = 'u32[]', space=smem, size = 0x4, offset = 0x4, fixed_abs, tag = 'smem constant byte address 0x4 - core index']
  #allocation1 [shape = 'u32[144,128]{1,0:T(1,128)}', space=vmem, size = 0x12000, scoped, tag = 'internal scratch']
  %s0 = inlined_call_operand.hbm [shape: f32[16,32], index: 0, kind: input, shape index: {}]
  %s1 = inlined_call_operand.hbm [shape: f32[32,32], index: 1, kind: input, shape index: {}]
  %s2 = inlined_call_operand.vmem [shape: f32[1,32], index: 2, kind: input, shape index: {}]
  %s3 = inlined_call_operand.hbm [shape: f32[32,128], index: 3, kind: input, shape index: {}]
  %s4 = inlined_call_operand.vmem [shape: f32[1,128], index: 4, kind: input, shape index: {}]
  %s5 = inlined_call_operand.hbm [shape: f32[16,128], index: 5, kind: output, shape index: {}]
  %s6 = sld [smem:[#allocation0]]
  $region42: #{tpu_custom_call.1} parent=0
    _
  %s8 = ssub.s32 1, %s6
  %s9 = scalar_select 0, %s8, %s6
  $region1: #{tpu_custom_call.1} parent=0
    #allocation2 [shape = 'u8[8192]{0}', space=vmem, size = 0x2000, scoped, tag = 'input window, operand 0, single buffered']
    #allocation3 [shape = 's32[1]{0}', space=sflag, size = 0x4, scoped, tag = 'scoped memory for tpu_custom_call.1']
    #allocation4 [shape = 's32[1]{0}', space=sflag, size = 0x4, scoped, tag = 'scoped memory for tpu_custom_call.1']
    #allocation5 [shape = 'u8[16384]{0}', space=vmem, size = 0x4000, scoped, tag = 'input window, operand 1, single buffered']
    #allocation6 [shape = 's32[1]{0}', space=sflag, size = 0x4, scoped, tag = 'scoped memory for tpu_custom_call.1']
    #allocation7 [shape = 'u8[16384]{0}', space=vmem, size = 0x4000, scoped, tag = 'input window, operand 3, single buffered']
    #allocation8 [shape = 'u8[8192]{0}', space=vmem, size = 0x2000, scoped, tag = 'output window, operand 0, single buffered']
    %10 = vsyncpa [#allocation3], 0
    %11 = vsyncpa [#allocation6], 0
    %12 = vsyncpa [#allocation4], 0
    // Predicated region
    $region2: #{tpu_custom_call.1} parent=1 // pred_check
      _
    $region3: #{tpu_custom_call.1} parent=1 // pred_check_branch
      %14 = sbr.rel (0) target = $region5
    $region4: #{tpu_custom_call.1} parent=1 // pred_region
      %s16 = ssub.s32 256, 256
      %17 = vsyncadd [#allocation3], %s16
      %s18 = sshll.u32 [#allocation2], 4
      %s19 = int_to_ptr.vmem [resolvable:$true] %s18
      %24 = dma.hbm_to_vmem [thread:$0]  %s0, 256, %s19, [#allocation3], 128, 128, 8
    $region5: #{tpu_custom_call.1} parent=1 // pred_fallthru
      _
    // Predicated region
    $region6: #{tpu_custom_call.1} parent=1 // pred_check
      _
    $region7: #{tpu_custom_call.1} parent=1 // pred_check_branch
      %26 = sbr.rel (0) target = $region9
    $region8: #{tpu_custom_call.1} parent=1 // pred_region
      %s28 = ssub.s32 512, 512
      %29 = vsyncadd [#allocation6], %s28
      %s30 = sshll.u32 [#allocation5], 4
      %s31 = int_to_ptr.vmem [resolvable:$true] %s30
      %36 = dma.hbm_to_vmem [thread:$0]  %s1, 512, %s31, [#allocation6], 128, 128, 8
    $region9: #{tpu_custom_call.1} parent=1 // pred_fallthru
      _
    // Predicated region
    $region10: #{tpu_custom_call.1} parent=1 // pred_check
      _
    $region11: #{tpu_custom_call.1} parent=1 // pred_check_branch
      %38 = sbr.rel (0) target = $region13
    $region12: #{tpu_custom_call.1} parent=1 // pred_region
      _
    $region13: #{tpu_custom_call.1} parent=1 // pred_fallthru
      _
    // Predicated region
    $region14: #{tpu_custom_call.1} parent=1 // pred_check
      _
    $region15: #{tpu_custom_call.1} parent=1 // pred_check_branch
      %40 = sbr.rel (0) target = $region17
    $region16: #{tpu_custom_call.1} parent=1 // pred_region
      %s42 = ssub.s32 512, 512
      %43 = vsyncadd [#allocation6], %s42
      %s44 = sshll.u32 [#allocation7], 4
      %s45 = int_to_ptr.vmem [resolvable:$true] %s44
      %50 = dma.hbm_to_vmem [thread:$0]  %s3, 512, %s45, [#allocation6], 128, 128, 8
    $region17: #{tpu_custom_call.1} parent=1 // pred_fallthru
      _
    // Predicated region
    $region18: #{tpu_custom_call.1} parent=1 // pred_check
      _
    $region19: #{tpu_custom_call.1} parent=1 // pred_check_branch
      %52 = sbr.rel (0) target = $region21
    $region20: #{tpu_custom_call.1} parent=1 // pred_region
      _
    $region21: #{tpu_custom_call.1} parent=1 // pred_fallthru
      _
    // Predicated region
    $region22: #{tpu_custom_call.1} parent=1 // pred_check
      _
    $region23: #{tpu_custom_call.1} parent=1 // pred_check_branch
      %54 = sbr.rel (0) target = $region25
    $region24: #{tpu_custom_call.1} parent=1 // pred_region
      %55 = dma.done [#allocation3], 256
    $region25: #{tpu_custom_call.1} parent=1 // pred_fallthru
      _
    // Predicated region
    $region26: #{tpu_custom_call.1} parent=1 // pred_check
      _
    $region27: #{tpu_custom_call.1} parent=1 // pred_check_branch
      %57 = sbr.rel (0) target = $region29
    $region28: #{tpu_custom_call.1} parent=1 // pred_region
      %58 = dma.done [#allocation6], 512
    $region29: #{tpu_custom_call.1} parent=1 // pred_fallthru
      _
    // Predicated region
    $region30: #{tpu_custom_call.1} parent=1 // pred_check
      _
    $region31: #{tpu_custom_call.1} parent=1 // pred_check_branch
      %60 = sbr.rel (0) target = $region33
    $region32: #{tpu_custom_call.1} parent=1 // pred_region
      %61 = dma.done [#allocation6], 512
    $region33: #{tpu_custom_call.1} parent=1 // pred_fallthru
      _
    %v62 = vld [vmem:[#allocation5] sm:$0xff]
    %v63 = vld [vmem:[#allocation5 + $0x8] sm:$0xff]
    %v64 = vld [vmem:[#allocation5 + $0x10] sm:$0xff]
    %v65 = vld [vmem:[#allocation5 + $0x18] sm:$0xff]
    %v66 = vld [vmem:[%s2] sm:$0x1]
    %v67 = vld [vmem:[#allocation7] sm:$0xff]
    %v68 = vld [vmem:[#allocation7 + $0x8] sm:$0xff]
    %v69 = vld [vmem:[#allocation7 + $0x10] sm:$0xff]
    %v70 = vld [vmem:[#allocation7 + $0x18] sm:$0xff]
    %v71 = vld [vmem:[%s4] sm:$0x1]
    %v72 = vld [vmem:[#allocation2] sm:$0xff]
    %v73 = vld [vmem:[#allocation2 + $0x8] sm:$0xff]
    %v75 = vlaneseq
    %v76 = vshrl.u32 %v75, 7
    %v77 = vsub.s32 0, %v76
    %v78 = vrot.slane %v66, %v77
    %vm80 = vcmask 261120
    %v82 = vsel %vm80, %v72, 0
    %v85 = vsel %vm80, %v73, 0
    %87 = vmatprep.subr.mxu0 0.0
    %88 = vmatpush1.msra.mxu0 %v62
    %89 = vmatprep.subr.mxu0 0.0
    %90 = vmatpush1.msra.mxu0 %v63
    %91 = vmatprep.subr.mxu0 0.0
    %92 = vmatpush1.msra.mxu0 %v64
    %93 = vmatprep.subr.mxu0 0.0
    %94 = vmatpush1.msra.mxu0 %v65
    %95 = vmatprep.subr.mxu0 0.0
    %96 = vmatpush1.msra.mxu0 0.0
    %97 = vmatprep.subr.mxu0 0.0
    %98 = vmatpush1.msra.mxu0 0.0
    %99 = vmatprep.subr.mxu0 0.0
    %100 = vmatpush1.msra.mxu0 0.0
    %101 = vmatprep.subr.mxu0 0.0
    %102 = vmatpush1.msra.mxu0 0.0
    %103 = vmatprep.subr.mxu0 0.0
    %104 = vmatpush1.msra.mxu0 0.0
    %105 = vmatprep.subr.mxu0 0.0
    %106 = vmatpush1.msra.mxu0 0.0
    %107 = vmatprep.subr.mxu0 0.0
    %108 = vmatpush1.msra.mxu0 0.0
    %109 = vmatprep.subr.mxu0 0.0
    %110 = vmatpush1.msra.mxu0 0.0
    %111 = vmatprep.subr.mxu0 0.0
    %112 = vmatpush1.msra.mxu0 0.0
    %113 = vmatprep.subr.mxu0 0.0
    %114 = vmatpush1.msra.mxu0 0.0
    %115 = vmatprep.subr.mxu0 0.0
    %116 = vmatpush1.msra.mxu0 0.0
    %117 = vmatprep.subr.mxu0 0.0
    %118 = vmatpush1.msra.mxu0 0.0
    %119 = vmatprep.subr.mxu0 0.0
    %120 = vmatpush1.msra.mxu0 0.0
    %121 = vmatprep.subr.mxu0 0.0
    %122 = vmatpush1.msra.mxu0 0.0
    %123 = vmatprep.subr.mxu0 0.0
    %124 = vmatpush1.msra.mxu0 0.0
    %125 = vmatprep.subr.mxu0 0.0
    %126 = vmatpush1.msra.mxu0 0.0
    %127 = vmatprep.subr.mxu0 0.0
    %128 = vmatpush1.msra.mxu0 0.0
    %129 = vmatprep.subr.mxu0 0.0
    %130 = vmatpush1.msra.mxu0 0.0
    %131 = vmatprep.subr.mxu0 0.0
    %132 = vmatpush1.msra.mxu0 0.0
    %133 = vmatprep.subr.mxu0 0.0
    %134 = vmatpush1.msra.mxu0 0.0
    %135 = vmatprep.subr.mxu0 0.0
    %136 = vmatpush1.msra.mxu0 0.0
    %137 = vmatprep.subr.mxu0 0.0
    %138 = vmatpush1.msra.mxu0 0.0
    %139 = vmatprep.subr.mxu0 0.0
    %140 = vmatpush1.msra.mxu0 0.0
    %141 = vmatprep.subr.mxu0 0.0
    %142 = vmatpush1.msra.mxu0 0.0
    %143 = vmatprep.subr.mxu0 0.0
    %144 = vmatpush1.msra.mxu0 0.0
    %145 = vmatprep.subr.mxu0 0.0
    %146 = vmatpush1.msra.mxu0 0.0
    %147 = vmatprep.subr.mxu0 0.0
    %148 = vmatpush1.msra.mxu0 0.0
    %149 = vmatprep.subr.mxu0 0.0
    %150 = vmatpush1.msra.mxu0 0.0
    %151 = vmatprep.mubr.f32.mxu0 0.0
    %152 = vmatmul.mubr.f32.gmra.mrb[0].mxu0 %v82
    %v153 = vpop.f32.mrb[0].mxu0
    %v154 = vadd.f32 %v78, %v153
    %v155 = vpop.f32.mrb[0].mxu0
    %156 = vmatprep.mubr.f32.mxu0 0.0
    %157 = vmatmul.mubr.f32.gmra.mrb[0].mxu0 %v85
    %v158 = vpop.f32.mrb[0].mxu0
    %v159 = vadd.f32 %v78, %v158
    %v160 = vpop.f32.mrb[0].mxu0
    %161 = vdwg.mxu0
    %v162 = vtanh.pop %v154
    %v163 = vtanh.pop %v159
    %v165 = vlaneseq
    %v166 = vshrl.u32 %v165, 7
    %v167 = vsub.s32 0, %v166
    %v168 = vrot.slane %v71, %v167
    %v171 = vsel %vm80, %v162, 0
    %v174 = vsel %vm80, %v163, 0
    %176 = vmatprep.subr.mxu0 0.0
    %177 = vmatpush1.msra.mxu0 %v67
    %178 = vmatprep.subr.mxu0 0.0
    %179 = vmatpush1.msra.mxu0 %v68
    %180 = vmatprep.subr.mxu0 0.0
    %181 = vmatpush1.msra.mxu0 %v69
    %182 = vmatprep.subr.mxu0 0.0
    %183 = vmatpush1.msra.mxu0 %v70
    %184 = vmatprep.subr.mxu0 0.0
    %185 = vmatpush1.msra.mxu0 0.0
    %186 = vmatprep.subr.mxu0 0.0
    %187 = vmatpush1.msra.mxu0 0.0
    %188 = vmatprep.subr.mxu0 0.0
    %189 = vmatpush1.msra.mxu0 0.0
    %190 = vmatprep.subr.mxu0 0.0
    %191 = vmatpush1.msra.mxu0 0.0
    %192 = vmatprep.subr.mxu0 0.0
    %193 = vmatpush1.msra.mxu0 0.0
    %194 = vmatprep.subr.mxu0 0.0
    %195 = vmatpush1.msra.mxu0 0.0
    %196 = vmatprep.subr.mxu0 0.0
    %197 = vmatpush1.msra.mxu0 0.0
    %198 = vmatprep.subr.mxu0 0.0
    %199 = vmatpush1.msra.mxu0 0.0
    %200 = vmatprep.subr.mxu0 0.0
    %201 = vmatpush1.msra.mxu0 0.0
    %202 = vmatprep.subr.mxu0 0.0
    %203 = vmatpush1.msra.mxu0 0.0
    %204 = vmatprep.subr.mxu0 0.0
    %205 = vmatpush1.msra.mxu0 0.0
    %206 = vmatprep.subr.mxu0 0.0
    %207 = vmatpush1.msra.mxu0 0.0
    %208 = vmatprep.subr.mxu0 0.0
    %209 = vmatpush1.msra.mxu0 0.0
    %210 = vmatprep.subr.mxu0 0.0
    %211 = vmatpush1.msra.mxu0 0.0
    %212 = vmatprep.subr.mxu0 0.0
    %213 = vmatpush1.msra.mxu0 0.0
    %214 = vmatprep.subr.mxu0 0.0
    %215 = vmatpush1.msra.mxu0 0.0
    %216 = vmatprep.subr.mxu0 0.0
    %217 = vmatpush1.msra.mxu0 0.0
    %218 = vmatprep.subr.mxu0 0.0
    %219 = vmatpush1.msra.mxu0 0.0
    %220 = vmatprep.subr.mxu0 0.0
    %221 = vmatpush1.msra.mxu0 0.0
    %222 = vmatprep.subr.mxu0 0.0
    %223 = vmatpush1.msra.mxu0 0.0
    %224 = vmatprep.subr.mxu0 0.0
    %225 = vmatpush1.msra.mxu0 0.0
    %226 = vmatprep.subr.mxu0 0.0
    %227 = vmatpush1.msra.mxu0 0.0
    %228 = vmatprep.subr.mxu0 0.0
    %229 = vmatpush1.msra.mxu0 0.0
    %230 = vmatprep.subr.mxu0 0.0
    %231 = vmatpush1.msra.mxu0 0.0
    %232 = vmatprep.subr.mxu0 0.0
    %233 = vmatpush1.msra.mxu0 0.0
    %234 = vmatprep.subr.mxu0 0.0
    %235 = vmatpush1.msra.mxu0 0.0
    %236 = vmatprep.subr.mxu0 0.0
    %237 = vmatpush1.msra.mxu0 0.0
    %238 = vmatprep.subr.mxu0 0.0
    %239 = vmatpush1.msra.mxu0 0.0
    %240 = vmatprep.mubr.f32.mxu0 0.0
    %241 = vmatmul.mubr.f32.gmra.mrb[0].mxu0 %v171
    %v242 = vpop.f32.mrb[0].mxu0
    %v243 = vadd.f32 %v168, %v242
    %v244 = vpop.f32.mrb[0].mxu0
    %245 = vmatprep.mubr.f32.mxu0 0.0
    %246 = vmatmul.mubr.f32.gmra.mrb[0].mxu0 %v174
    %v247 = vpop.f32.mrb[0].mxu0
    %v248 = vadd.f32 %v168, %v247
    %v249 = vpop.f32.mrb[0].mxu0
    %250 = vdwg.mxu0
    %251 = vst [vmem:[#allocation8] sm:$0xff] %v243
    %252 = vst [vmem:[#allocation8 + $0x8] sm:$0xff] %v248
    // Predicated region
    $region34: #{tpu_custom_call.1} parent=1 // pred_check
      _
    $region35: #{tpu_custom_call.1} parent=1 // pred_check_branch
      %254 = sbr.rel (0) target = $region37
    $region36: #{tpu_custom_call.1} parent=1 // pred_region
      %s256 = ssub.s32 256, 256
      %257 = vsyncadd [#allocation4], %s256
      %s258 = sshll.u32 [#allocation8], 4
      %s259 = int_to_ptr.vmem [resolvable:$true] %s258
      %264 = dma.vmem_to_hbm [thread:$0]  %s259, 256, %s5, [#allocation4], 128, 128, 8
    $region37: #{tpu_custom_call.1} parent=1 // pred_fallthru
      _
    // Predicated region
    $region38: #{tpu_custom_call.1} parent=1 // pred_check
      _
    $region39: #{tpu_custom_call.1} parent=1 // pred_check_branch
      %266 = sbr.rel (0) target = $region41
    $region40: #{tpu_custom_call.1} parent=1 // pred_region
      %267 = dma.done [#allocation4], 256
    $region41: #{tpu_custom_call.1} parent=1 // pred_fallthru
      _
    %268 = vsyncpa [#allocation3], 1
    %269 = vsyncpa [#allocation6], 1
    %270 = vsyncpa [#allocation4], 1

</llo_original>
